<compile_context>
chip_gen: v6e
topology: v6e:2x2x1
jax: 0.10.0
libtpu: 0.0.40
codegen_flags: <defaults>
</compile_context>

<pallas_src>
import functools
import math

import jax
import jax.numpy as jnp
from jax.experimental import pallas as pl
from jax.experimental.pallas import tpu as pltpu


# ---------------------------------------------------------------------------
# Kernels
# ---------------------------------------------------------------------------
def _pe_add_kernel(x_ref, pe_ref, out_ref):
    # x_ref: (TS, B, D) tile;  pe_ref: (TS, D) matching PE slice.
    # Compute stays in the input dtype (no forced f32 upcast) so bf16 inputs
    # keep bf16 bandwidth / vreg pressure on v6e/v7x.
    out_ref[...] = (x_ref[...] + pe_ref[...][:, None, :]).astype(out_ref.dtype)


def _pe_add_dropout_kernel(x_ref, pe_ref, bits_ref, out_ref, *, threshold, scale):
    # Inverted dropout: keep with prob (1-p), scale kept values by 1/(1-p).
    # Keep decision is one integer compare against a precomputed 32-bit
    # threshold (no shift / int->float convert / float compare).
    y = x_ref[...] + pe_ref[...][:, None, :]
    keep = bits_ref[...] >= jnp.uint32(threshold)
    out_ref[...] = jnp.where(keep, y * scale, jnp.zeros_like(y)).astype(out_ref.dtype)


# ---------------------------------------------------------------------------
# PE table (identical math to the PyTorch __init__)
# ---------------------------------------------------------------------------
def make_sinusoidal_pe(max_len, d_model):
    assert d_model % 2 == 0, "d_model must be even (same constraint as the torch code)"
    position = jnp.arange(max_len, dtype=jnp.float32)[:, None]            # (L, 1)
    div_term = jnp.exp(
        jnp.arange(0, d_model, 2, dtype=jnp.float32)
        * (-math.log(10000.0) / d_model)
    )                                                                     # (D/2,)
    pe = jnp.zeros((max_len, d_model), jnp.float32)
    pe = pe.at[:, 0::2].set(jnp.sin(position * div_term))
    pe = pe.at[:, 1::2].set(jnp.cos(position * div_term))
    return pe                                                             # (L, D)


# ---------------------------------------------------------------------------
# Wrapper
# ---------------------------------------------------------------------------
def _choose_seq_tile(seq_len, row_bytes, target_block_bytes=2 * 1024 * 1024):
    """Largest multiple-of-8 seq-row count whose x block stays near ~2 MiB."""
    rows = target_block_bytes // max(row_bytes, 1)
    rows = max(8, (rows // 8) * 8)
    return seq_len if rows >= seq_len else rows


def positional_encoding(x, pe_table, *, p=0.1, training=False, rng_key=None,
                        seq_tile=None):
    """x: (S, B, D).  Returns x + pe[:S] with inverted dropout iff training."""
    S, B, D = x.shape
    assert pe_table.shape[0] >= S and pe_table.shape[1] == D
    assert 0.0 <= p < 1.0

    pe = pe_table[:S].astype(x.dtype)                        # (S, D)

    row_bytes = B * D * x.dtype.itemsize
    if seq_tile is None:
        ts = _choose_seq_tile(S, row_bytes)
    else:
        ts = min(int(seq_tile), S)
        if ts != S and ts % 8 != 0:                          # pe block sublane rule
            ts = max(8, (ts // 8) * 8)
    grid = (pl.cdiv(S, ts),)                                 # seq tiles are independent

    x_spec = pl.BlockSpec((ts, B, D), lambda i: (i, 0, 0))
    pe_spec = pl.BlockSpec((ts, D), lambda i: (i, 0))
    bits_spec = pl.BlockSpec((ts, B, D), lambda i: (i, 0, 0))
    out_spec = pl.BlockSpec((ts, B, D), lambda i: (i, 0, 0))

    compiler_params = pltpu.CompilerParams(
        dimension_semantics=("parallel",),                   # megacore-friendly on v7x
        vmem_limit_bytes=32 * 1024 * 1024,                   # safe on v5e/v6e/v7x
    )
    out_shape = jax.ShapeDtypeStruct((S, B, D), x.dtype)

    use_dropout = training and p > 0.0
    if not use_dropout:
        return pl.pallas_call(
            _pe_add_kernel,
            out_shape=out_shape,
            grid_spec=pltpu.PrefetchScalarGridSpec(
                num_scalar_prefetch=0, grid=grid,
                in_specs=[x_spec, pe_spec],
                out_specs=out_spec),
            compiler_params=compiler_params,
        )(x, pe)

    if rng_key is None:
        rng_key = jax.random.PRNGKey(0)
    # TODO(synk): on real TPU hardware, generate the dropout bits in-kernel with
    # pltpu.prng_seed / pltpu.prng_random_bits (per-tile seed mixed from the
    # program ids) to avoid streaming the mask from HBM; those primitives have
    # no CPU/interpret lowering, so the portable path streams host-made bits.
    bits = jax.random.bits(rng_key, x.shape, dtype=jnp.uint32)
    threshold = min(int(p * (1 << 32)), (1 << 32) - 1)
    kernel = functools.partial(_pe_add_dropout_kernel,
                               threshold=threshold, scale=1.0 / (1.0 - p))
    return pl.pallas_call(
        kernel,
        out_shape=out_shape,
        grid_spec=pltpu.PrefetchScalarGridSpec(
            num_scalar_prefetch=0, grid=grid,
            in_specs=[x_spec, pe_spec, bits_spec],
            out_specs=out_spec),
        compiler_params=compiler_params,
    )(x, pe, bits)


# ---------------------------------------------------------------------------
# Demo / correctness check
# ---------------------------------------------------------------------------
if __name__ == "__main__":
    d_model = 128          # lane-dense last dim (multiple of 128)
    max_len = 128
    seq_len = 64
    batch = 4
    p = 0.1

    key = jax.random.PRNGKey(0)
    x = jax.random.normal(key, (seq_len, batch, d_model), dtype=jnp.float32)
    pe_table = make_sinusoidal_pe(max_len, d_model)

    expected = x + pe_table[:seq_len][:, None, :]

    # Eval mode (dropout = identity): deterministic check against reference.
    # seq_tile=16 forces a 4-step grid so the pipelined path is exercised.
    out = positional_encoding(x, pe_table, p=p, training=False, seq_tile=16)
    out = jax.block_until_ready(out)
    assert out.shape == x.shape and out.dtype == x.dtype
    assert jnp.allclose(out, expected, atol=1e-6, rtol=1e-6)

    # Training mode: inverted dropout with a known bit stream -> exact check.
    drop_key = jax.random.PRNGKey(1234)
    out_train = positional_encoding(x, pe_table, p=p, training=True,
                                    rng_key=drop_key, seq_tile=16)
    out_train = jax.block_until_ready(out_train)

    bits = jax.random.bits(drop_key, x.shape, dtype=jnp.uint32)
    keep = bits >= jnp.uint32(min(int(p * (1 << 32)), (1 << 32) - 1))
    ref_train = jnp.where(keep, expected / (1.0 - p), 0.0)
    assert jnp.allclose(out_train, ref_train, atol=1e-5, rtol=1e-5)

    print("KERNEL_OK")
</pallas_src>

<mosaic_0001>
module attributes {stable_mosaic.version = 11 : i64} {
  func.func @_pe_add_kernel(%arg0: i32, %arg1: memref<16x4x128xf32, #tpu.memory_space<vmem>>, %arg2: memref<16x128xf32, #tpu.memory_space<vmem>>, %arg3: memref<16x4x128xf32, #tpu.memory_space<vmem>>) attributes {dimension_semantics = [#tpu.dimension_semantics<parallel>], iteration_bounds = array<i64: 4>, scalar_prefetch = 0 : i64, scratch_operands = 0 : i64, tpu.core_type = #tpu.core_type<tc>, window_params = [{transform_indices = @transform_0, window_bounds = array<i64: 16, 4, 128>}, {transform_indices = @transform_1, window_bounds = array<i64: 16, 128>}, {transform_indices = @transform_2, window_bounds = array<i64: 16, 4, 128>}]} {
    %c0 = arith.constant 0 : index
    %c0_0 = arith.constant 0 : index
    %c0_1 = arith.constant 0 : index
    %0 = vector.load %arg1[%c0, %c0_0, %c0_1] : memref<16x4x128xf32, #tpu.memory_space<vmem>>, vector<16x4x128xf32>
    %c0_2 = arith.constant 0 : index
    %c0_3 = arith.constant 0 : index
    %1 = vector.load %arg2[%c0_2, %c0_3] : memref<16x128xf32, #tpu.memory_space<vmem>>, vector<16x128xf32>
    %2 = vector.shape_cast %1 : vector<16x128xf32> to vector<16x1x128xf32>
    %3 = vector.broadcast %2 : vector<16x1x128xf32> to vector<16x4x128xf32>
    %4 = arith.addf %0, %3 : vector<16x4x128xf32>
    %c0_4 = arith.constant 0 : index
    %c0_5 = arith.constant 0 : index
    %c0_6 = arith.constant 0 : index
    %5 = vector.load %arg3[%c0_4, %c0_5, %c0_6] : memref<16x4x128xf32, #tpu.memory_space<vmem>>, vector<16x4x128xf32>
    tpu.vector_store %arg3[%c0_4, %c0_5, %c0_6], %4 {strides = array<i32>} : memref<16x4x128xf32, #tpu.memory_space<vmem>>, vector<16x4x128xf32>,
    return
  }
  func.func @transform_0(%arg0: i32) -> (i32, i32, i32) {
    %c0_i32 = arith.constant 0 : i32
    %c0_i32_0 = arith.constant 0 : i32
    %c0_i32_1 = arith.constant 0 : i32
    return %arg0, %c0_i32, %c0_i32_0 : i32, i32, i32
  }
  func.func @transform_1(%arg0: i32) -> (i32, i32) {
    %c0_i32 = arith.constant 0 : i32
    %c0_i32_0 = arith.constant 0 : i32
    return %arg0, %c0_i32 : i32, i32
  }
  func.func @transform_2(%arg0: i32) -> (i32, i32, i32) {
    %c0_i32 = arith.constant 0 : i32
    %c0_i32_0 = arith.constant 0 : i32
    %c0_i32_1 = arith.constant 0 : i32
    return %arg0, %c0_i32, %c0_i32_0 : i32, i32, i32
  }
}

</mosaic_0001>

<llo_original>
// kernel: tpu_custom_call.1
$region0: #{tpu_custom_call.1}
  #allocation0 [shape = 'u32[]', space=smem, size = 0x4, offset = 0x4, fixed_abs, tag = 'smem constant byte address 0x4 - core index']
  #allocation1 [shape = 'u32[144,128]{1,0:T(1,128)}', space=vmem, size = 0x12000, scoped, tag = 'internal scratch']
  %s0 = inlined_call_operand.hbm [shape: f32[64,4,128], index: 0, kind: input, shape index: {}]
  %s1 = inlined_call_operand.hbm [shape: f32[64,128], index: 1, kind: input, shape index: {}]
  %s2 = inlined_call_operand.hbm [shape: f32[64,4,128], index: 2, kind: output, shape index: {}]
  %s3 = sld [smem:[#allocation0]]
  $region49: #{tpu_custom_call.1} parent=0
    _
  %s5 = ssub.s32 1, %s3
  %s6 = scalar_select 0, %s5, %s3
  $region1: #{tpu_custom_call.1} parent=0
    #allocation2 [shape = 'u8[65536]{0}', space=vmem, size = 0x10000, scoped, tag = 'input window, operand 0']
    #allocation3 [shape = 's32[2]{0}', space=sflag, size = 0x8, scoped, tag = 'scoped memory for tpu_custom_call.1']
    #allocation4 [shape = 's32[2]{0}', space=sflag, size = 0x8, scoped, tag = 'scoped memory for tpu_custom_call.1']
    #allocation5 [shape = 'u8[16384]{0}', space=vmem, size = 0x4000, scoped, tag = 'input window, operand 1']
    #allocation6 [shape = 's32[2]{0}', space=sflag, size = 0x8, scoped, tag = 'scoped memory for tpu_custom_call.1']
    #allocation7 [shape = 'u8[65536]{0}', space=vmem, size = 0x10000, scoped, tag = 'output window, operand 0']
    %7 = vsyncpa [#allocation3], 0
    %s8 = scalar_lea.sflag [#allocation3], 1
    %9 = vsyncpa %s8, 0
    %10 = vsyncpa [#allocation6], 0
    %s11 = scalar_lea.sflag [#allocation6], 1
    %12 = vsyncpa %s11, 0
    %13 = vsyncpa [#allocation4], 0
    %s14 = scalar_lea.sflag [#allocation4], 1
    %15 = vsyncpa %s14, 0
    loop: start=0, step=1, limit=6
    $region2: #{tpu_custom_call.1} parent=1 // loop_pre_header
      _
    $region3: #{tpu_custom_call.1} parent=1 // loop_header
      %s17 = sphi 0, %s21
      %p18 = scmp.ge.s32.totalorder %s17, 6
      %s27 = sphi 0, %s29
      %s30 = sphi 0, %s27
      %s31 = sphi 0, %s30
      %s47 = sphi 0, %s31
      %s53 = sphi 0, %s55
      %s56 = sphi 0, %s53
      %s57 = sphi 0, %s56
      %s73 = sphi 0, %s57
      %s79 = sphi 0, %s81
      %s82 = sphi 0, %s79
      %s83 = sphi 0, %s82
      %s99 = sphi 0, %s83
    $region4: #{tpu_custom_call.1} parent=1 // loop_header_branch
      %20 = sbr.rel (%p18) target = $region8
    $region5: #{tpu_custom_call.1} parent=1 // loop_body
      %s22 = ssub.s32 %s17, 1
      %s23 = ssub.s32 %s17, 2
      %s24 = sadd.s32 %s17, 1
      %s25 = ssub.s32 %s17, %s24
      %p26 = scmp.eq.s32.totalorder %s25, 0
      %s28 = sadd.s32 %s27, 1
      %s29 = scalar_select %p26, %s27, %s28
      %p32 = pneg %p26
      %p33 = scmp.eq.s32.totalorder %s17, 3
      %p34 = por %p32, %p33
      %p35 = scmp.ne.s32.totalorder %s27, %s30
      %p36 = scmp.eq.s32.totalorder %s17, 0
      %p37 = por %p35, %p36
      %p38 = scmp.ne.s32.totalorder %s27, %s30
      %p39 = scmp.eq.s32.totalorder %s22, 3
      %p40 = por %p38, %p39
      %p41 = scmp.ne.s32.totalorder %s30, %s31
      %p42 = scmp.eq.s32.totalorder %s22, 0
      %p43 = por %p41, %p42
      %p44 = scmp.ne.s32.totalorder %s30, %s31
      %p45 = scmp.eq.s32.totalorder %s23, 3
      %p46 = por %p44, %p45
      %p48 = scmp.ne.s32.totalorder %s31, %s47
      %p49 = scmp.eq.s32.totalorder %s23, 0
      %p50 = por %p48, %p49
      %s51 = ssub.s32 %s17, %s24
      %p52 = scmp.eq.s32.totalorder %s51, 0
      %s54 = sadd.s32 %s53, 1
      %s55 = scalar_select %p52, %s53, %s54
      %p58 = pneg %p52
      %p59 = scmp.eq.s32.totalorder %s17, 3
      %p60 = por %p58, %p59
      %p61 = scmp.ne.s32.totalorder %s53, %s56
      %p62 = scmp.eq.s32.totalorder %s17, 0
      %p63 = por %p61, %p62
      %p64 = scmp.ne.s32.totalorder %s53, %s56
      %p65 = scmp.eq.s32.totalorder %s22, 3
      %p66 = por %p64, %p65
      %p67 = scmp.ne.s32.totalorder %s56, %s57
      %p68 = scmp.eq.s32.totalorder %s22, 0
      %p69 = por %p67, %p68
      %p70 = scmp.ne.s32.totalorder %s56, %s57
      %p71 = scmp.eq.s32.totalorder %s23, 3
      %p72 = por %p70, %p71
      %p74 = scmp.ne.s32.totalorder %s57, %s73
      %p75 = scmp.eq.s32.totalorder %s23, 0
      %p76 = por %p74, %p75
      %s77 = ssub.s32 %s17, %s24
      %p78 = scmp.eq.s32.totalorder %s77, 0
      %s80 = sadd.s32 %s79, 1
      %s81 = scalar_select %p78, %s79, %s80
      %p84 = pneg %p78
      %p85 = scmp.eq.s32.totalorder %s17, 3
      %p86 = por %p84, %p85
      %p87 = scmp.ne.s32.totalorder %s79, %s82
      %p88 = scmp.eq.s32.totalorder %s17, 0
      %p89 = por %p87, %p88
      %p90 = scmp.ne.s32.totalorder %s79, %s82
      %p91 = scmp.eq.s32.totalorder %s22, 3
      %p92 = por %p90, %p91
      %p93 = scmp.ne.s32.totalorder %s82, %s83
      %p94 = scmp.eq.s32.totalorder %s22, 0
      %p95 = por %p93, %p94
      %p96 = scmp.ne.s32.totalorder %s82, %s83
      %p97 = scmp.eq.s32.totalorder %s23, 3
      %p98 = por %p96, %p97
      %p100 = scmp.ne.s32.totalorder %s83, %s99
      %p101 = scmp.eq.s32.totalorder %s23, 0
      %p102 = por %p100, %p101
      %p103 = scmp.le.s32.totalorder 1, %s17
      %p104 = scmp.lt.s32.totalorder %s17, 5
      %p105 = pnand %p103, %p104
      %p106 = pneg %p105
      // Predicated region
      $region9: #{tpu_custom_call.1} parent=5 // pred_check
        _
      $region10: #{tpu_custom_call.1} parent=5 // pred_check_branch
        %108 = sbr.rel (%p105) target = $region12
      $region11: #{tpu_custom_call.1} parent=5 // pred_region
        %s109 = ssub.s32 %s17, 1
      $region12: #{tpu_custom_call.1} parent=5 // pred_fallthru
        _
      %p110 = scmp.lt.s32.totalorder %s17, 4
      // Predicated region
      $region13: #{tpu_custom_call.1} parent=5 // pred_check
        %p111 = pneg %p110
      $region14: #{tpu_custom_call.1} parent=5 // pred_check_branch
        %113 = sbr.rel (%p111) target = $region16
      $region15: #{tpu_custom_call.1} parent=5 // pred_region
        // Predicated region
        $region17: #{tpu_custom_call.1} parent=15 // pred_check
          %p114 = pneg %p37
        $region18: #{tpu_custom_call.1} parent=15 // pred_check_branch
          %116 = sbr.rel (%p114) target = $region20
        $region19: #{tpu_custom_call.1} parent=15 // pred_region
          %s117 = sand.u32 %s27, 1
          %s118 = scalar_lea.sflag [#allocation3], %s117
          %s119 = sand.u32 %s27, 1
          %s120 = smul.addr %s119, 64
          %s121 = scalar_lea.vmem [#allocation2], %s120
          %s122 = smul.u32 16, %s17
          %s124 = ssub.s32 1024, 1024
          %125 = vsyncadd %s118, %s124
          %s126 = smul.addr %s122, 64
          %s127 = scalar_lea.hbm %s0, %s126
          %s128 = sshll.u32 %s121, 4
          %s129 = int_to_ptr.vmem [resolvable:$true] %s128
          %134 = dma.hbm_to_vmem [thread:$0]  %s127, 1024, %s129, %s118, 64, 64, 4
        $region20: #{tpu_custom_call.1} parent=15 // pred_fallthru
          _
        // Predicated region
        $region21: #{tpu_custom_call.1} parent=15 // pred_check
          %p135 = pneg %p63
        $region22: #{tpu_custom_call.1} parent=15 // pred_check_branch
          %137 = sbr.rel (%p135) target = $region24
        $region23: #{tpu_custom_call.1} parent=15 // pred_region
          %s138 = sand.u32 %s53, 1
          %s139 = scalar_lea.sflag [#allocation6], %s138
          %s140 = sand.u32 %s53, 1
          %s141 = smul.addr %s140, 16
          %s142 = scalar_lea.vmem [#allocation5], %s141
          %s143 = smul.u32 2, %s17
          %s145 = ssub.s32 256, 256
          %146 = vsyncadd %s139, %s145
          %s147 = smul.addr %s143, 128
          %s148 = scalar_lea.hbm %s1, %s147
          %s149 = sshll.u32 %s142, 4
          %s150 = int_to_ptr.vmem [resolvable:$true] %s149
          %155 = dma.hbm_to_vmem [thread:$0]  %s148, 256, %s150, %s139, 128, 128, 8
        $region24: #{tpu_custom_call.1} parent=15 // pred_fallthru
          _
      $region16: #{tpu_custom_call.1} parent=5 // pred_fallthru
        _
      %p156 = scmp.le.s32.totalorder 1, %s17
      %p157 = scmp.lt.s32.totalorder %s17, 5
      %p158 = pnand %p156, %p157
      %p159 = pneg %p158
      // Predicated region
      $region25: #{tpu_custom_call.1} parent=5 // pred_check
        _
      $region26: #{tpu_custom_call.1} parent=5 // pred_check_branch
        %161 = sbr.rel (%p158) target = $region28
      $region27: #{tpu_custom_call.1} parent=5 // pred_region
        %s162 = ssub.s32 %s17, 1
        %s163 = sand.u32 %s30, 1
        %s164 = scalar_lea.sflag [#allocation3], %s163
        %s165 = sand.u32 %s30, 1
        %s166 = smul.addr %s165, 64
        %s167 = scalar_lea.vmem [#allocation2], %s166
        // Predicated region
        $region29: #{tpu_custom_call.1} parent=27 // pred_check
          %p168 = pneg %p43
        $region30: #{tpu_custom_call.1} parent=27 // pred_check_branch
          %170 = sbr.rel (%p168) target = $region32
        $region31: #{tpu_custom_call.1} parent=27 // pred_region
          %171 = dma.done %s164, 1024
        $region32: #{tpu_custom_call.1} parent=27 // pred_fallthru
          _
        %s172 = sand.u32 %s56, 1
        %s173 = scalar_lea.sflag [#allocation6], %s172
        %s174 = sand.u32 %s56, 1
        %s175 = smul.addr %s174, 16
        %s176 = scalar_lea.vmem [#allocation5], %s175
        // Predicated region
        $region33: #{tpu_custom_call.1} parent=27 // pred_check
          %p177 = pneg %p69
        $region34: #{tpu_custom_call.1} parent=27 // pred_check_branch
          %179 = sbr.rel (%p177) target = $region36
        $region35: #{tpu_custom_call.1} parent=27 // pred_region
          %180 = dma.done %s173, 256
        $region36: #{tpu_custom_call.1} parent=27 // pred_fallthru
          _
        %s181 = sand.u32 %s30, 1
        %s182 = scalar_lea.sflag [#allocation3], %s181
        %s183 = sand.u32 %s30, 1
        %s184 = smul.addr %s183, 64
        %s185 = scalar_lea.vmem [#allocation2], %s184
        %p186 = pneg %p43
        %p187 = pneg %p40
        %s188 = sand.u32 %s56, 1
        %s189 = scalar_lea.sflag [#allocation6], %s188
        %s190 = sand.u32 %s56, 1
        %s191 = smul.addr %s190, 16
        %s192 = scalar_lea.vmem [#allocation5], %s191
        %p193 = pneg %p69
        %p194 = pneg %p66
        %p195 = pneg %p95
        %p196 = pneg %p92
        %s197 = sand.u32 %s82, 1
        %s198 = scalar_lea.sflag [#allocation4], %s197
        %s199 = sand.u32 %s82, 1
        %s200 = smul.addr %s199, 64
        %s201 = scalar_lea.vmem [#allocation7], %s200
        %s202 = smul.u32 16, %s22
        %s203 = smul.u32 2, %s22
        %s204 = smul.u32 16, %s22
        %v205 = vld [vmem:[%s167] sm:$0xf]
        %v206 = vld [vmem:[%s167 + $0x4] sm:$0xf]
        %v207 = vld [vmem:[%s167 + $0x8] sm:$0xf]
        %v208 = vld [vmem:[%s167 + $0xc] sm:$0xf]
        %v209 = vld [vmem:[%s167 + $0x10] sm:$0xf]
        %v210 = vld [vmem:[%s167 + $0x14] sm:$0xf]
        %v211 = vld [vmem:[%s167 + $0x18] sm:$0xf]
        %v212 = vld [vmem:[%s167 + $0x1c] sm:$0xf]
        %v213 = vld [vmem:[%s167 + $0x20] sm:$0xf]
        %v214 = vld [vmem:[%s167 + $0x24] sm:$0xf]
        %v215 = vld [vmem:[%s167 + $0x28] sm:$0xf]
        %v216 = vld [vmem:[%s167 + $0x2c] sm:$0xf]
        %v217 = vld [vmem:[%s167 + $0x30] sm:$0xf]
        %v218 = vld [vmem:[%s167 + $0x34] sm:$0xf]
        %v219 = vld [vmem:[%s167 + $0x38] sm:$0xf]
        %v220 = vld [vmem:[%s167 + $0x3c] sm:$0xf]
        %v221 = vld [vmem:[%s176] sm:$0xff]
        %v222 = vld [vmem:[%s176 + $0x8] sm:$0xff]
        %v225 = vcombine.high %v221, %v221
        %v227 = vunpack.c.l.s4 1966171168
        %v228 = vunpack.c.0.s8 %v227
        %v229 = vlaneseq
        %v230 = vshrl.u32 %v229, 7
        %v231 = vsub.s32 %v228, %v230
        %v232 = vrot.slane %v221, %v231
        %v234 = vunpack.c.l.s4 1966171168
        %v235 = vunpack.c.0.s8 %v234
        %v236 = vlaneseq
        %v237 = vshrl.u32 %v236, 7
        %v238 = vsub.s32 %v235, %v237
        %v239 = vrot.slane %v225, %v238
        %v240 = vcombine.high %v232, %v232
        %v241 = vcombine.high %v239, %v239
        %v243 = vunpack.c.l.s4 1966171168
        %v244 = vunpack.c.0.s8 %v243
        %v245 = vlaneseq
        %v246 = vshrl.u32 %v245, 7
        %v247 = vsub.s32 %v244, %v246
        %v248 = vrot.slane %v232, %v247
        %v250 = vunpack.c.l.s4 1966171168
        %v251 = vunpack.c.0.s8 %v250
        %v252 = vlaneseq
        %v253 = vshrl.u32 %v252, 7
        %v254 = vsub.s32 %v251, %v253
        %v255 = vrot.slane %v239, %v254
        %v257 = vunpack.c.l.s4 1966171168
        %v258 = vunpack.c.0.s8 %v257
        %v259 = vlaneseq
        %v260 = vshrl.u32 %v259, 7
        %v261 = vsub.s32 %v258, %v260
        %v262 = vrot.slane %v240, %v261
        %v264 = vunpack.c.l.s4 1966171168
        %v265 = vunpack.c.0.s8 %v264
        %v266 = vlaneseq
        %v267 = vshrl.u32 %v266, 7
        %v268 = vsub.s32 %v265, %v267
        %v269 = vrot.slane %v241, %v268
        %v270 = vcombine.high %v248, %v248
        %v271 = vcombine.high %v255, %v255
        %v272 = vcombine.high %v262, %v262
        %v273 = vcombine.high %v269, %v269
        %v274 = vcombine.high %v222, %v222
        %v276 = vunpack.c.l.s4 1966171168
        %v277 = vunpack.c.0.s8 %v276
        %v278 = vlaneseq
        %v279 = vshrl.u32 %v278, 7
        %v280 = vsub.s32 %v277, %v279
        %v281 = vrot.slane %v222, %v280
        %v283 = vunpack.c.l.s4 1966171168
        %v284 = vunpack.c.0.s8 %v283
        %v285 = vlaneseq
        %v286 = vshrl.u32 %v285, 7
        %v287 = vsub.s32 %v284, %v286
        %v288 = vrot.slane %v274, %v287
        %v289 = vcombine.high %v281, %v281
        %v290 = vcombine.high %v288, %v288
        %v292 = vunpack.c.l.s4 1966171168
        %v293 = vunpack.c.0.s8 %v292
        %v294 = vlaneseq
        %v295 = vshrl.u32 %v294, 7
        %v296 = vsub.s32 %v293, %v295
        %v297 = vrot.slane %v281, %v296
        %v299 = vunpack.c.l.s4 1966171168
        %v300 = vunpack.c.0.s8 %v299
        %v301 = vlaneseq
        %v302 = vshrl.u32 %v301, 7
        %v303 = vsub.s32 %v300, %v302
        %v304 = vrot.slane %v288, %v303
        %v306 = vunpack.c.l.s4 1966171168
        %v307 = vunpack.c.0.s8 %v306
        %v308 = vlaneseq
        %v309 = vshrl.u32 %v308, 7
        %v310 = vsub.s32 %v307, %v309
        %v311 = vrot.slane %v289, %v310
        %v313 = vunpack.c.l.s4 1966171168
        %v314 = vunpack.c.0.s8 %v313
        %v315 = vlaneseq
        %v316 = vshrl.u32 %v315, 7
        %v317 = vsub.s32 %v314, %v316
        %v318 = vrot.slane %v290, %v317
        %v319 = vcombine.high %v297, %v297
        %v320 = vcombine.high %v304, %v304
        %v321 = vcombine.high %v311, %v311
        %v322 = vcombine.high %v318, %v318
        %v323 = vlaneseq
        %v324 = vshrl.u32 %v323, 7
        %v325 = vsub.s32 0, %v324
        %v326 = vrot.slane %v248, %v325
        %v327 = vlaneseq
        %v328 = vshrl.u32 %v327, 7
        %v329 = vsub.s32 0, %v328
        %v330 = vrot.slane %v262, %v329
        %v331 = vlaneseq
        %v332 = vshrl.u32 %v331, 7
        %v333 = vsub.s32 0, %v332
        %v334 = vrot.slane %v270, %v333
        %v335 = vlaneseq
        %v336 = vshrl.u32 %v335, 7
        %v337 = vsub.s32 0, %v336
        %v338 = vrot.slane %v272, %v337
        %v339 = vlaneseq
        %v340 = vshrl.u32 %v339, 7
        %v341 = vsub.s32 0, %v340
        %v342 = vrot.slane %v255, %v341
        %v343 = vlaneseq
        %v344 = vshrl.u32 %v343, 7
        %v345 = vsub.s32 0, %v344
        %v346 = vrot.slane %v269, %v345
        %v347 = vlaneseq
        %v348 = vshrl.u32 %v347, 7
        %v349 = vsub.s32 0, %v348
        %v350 = vrot.slane %v271, %v349
        %v351 = vlaneseq
        %v352 = vshrl.u32 %v351, 7
        %v353 = vsub.s32 0, %v352
        %v354 = vrot.slane %v273, %v353
        %v355 = vlaneseq
        %v356 = vshrl.u32 %v355, 7
        %v357 = vsub.s32 0, %v356
        %v358 = vrot.slane %v297, %v357
        %v359 = vlaneseq
        %v360 = vshrl.u32 %v359, 7
        %v361 = vsub.s32 0, %v360
        %v362 = vrot.slane %v311, %v361
        %v363 = vlaneseq
        %v364 = vshrl.u32 %v363, 7
        %v365 = vsub.s32 0, %v364
        %v366 = vrot.slane %v319, %v365
        %v367 = vlaneseq
        %v368 = vshrl.u32 %v367, 7
        %v369 = vsub.s32 0, %v368
        %v370 = vrot.slane %v321, %v369
        %v371 = vlaneseq
        %v372 = vshrl.u32 %v371, 7
        %v373 = vsub.s32 0, %v372
        %v374 = vrot.slane %v304, %v373
        %v375 = vlaneseq
        %v376 = vshrl.u32 %v375, 7
        %v377 = vsub.s32 0, %v376
        %v378 = vrot.slane %v318, %v377
        %v379 = vlaneseq
        %v380 = vshrl.u32 %v379, 7
        %v381 = vsub.s32 0, %v380
        %v382 = vrot.slane %v320, %v381
        %v383 = vlaneseq
        %v384 = vshrl.u32 %v383, 7
        %v385 = vsub.s32 0, %v384
        %v386 = vrot.slane %v322, %v385
        %v403 = vadd.f32 %v205, %v326
        %v404 = vadd.f32 %v206, %v330
        %v405 = vadd.f32 %v207, %v334
        %v406 = vadd.f32 %v208, %v338
        %v407 = vadd.f32 %v209, %v342
        %v408 = vadd.f32 %v210, %v346
        %v409 = vadd.f32 %v211, %v350
        %v410 = vadd.f32 %v212, %v354
        %v411 = vadd.f32 %v213, %v358
        %v412 = vadd.f32 %v214, %v362
        %v413 = vadd.f32 %v215, %v366
        %v414 = vadd.f32 %v216, %v370
        %v415 = vadd.f32 %v217, %v374
        %v416 = vadd.f32 %v218, %v378
        %v417 = vadd.f32 %v219, %v382
        %v418 = vadd.f32 %v220, %v386
        %419 = vst [vmem:[%s201] sm:$0xf] %v403
        %420 = vst [vmem:[%s201 + $0x4] sm:$0xf] %v404
        %421 = vst [vmem:[%s201 + $0x8] sm:$0xf] %v405
        %422 = vst [vmem:[%s201 + $0xc] sm:$0xf] %v406
        %423 = vst [vmem:[%s201 + $0x10] sm:$0xf] %v407
        %424 = vst [vmem:[%s201 + $0x14] sm:$0xf] %v408
        %425 = vst [vmem:[%s201 + $0x18] sm:$0xf] %v409
        %426 = vst [vmem:[%s201 + $0x1c] sm:$0xf] %v410
        %427 = vst [vmem:[%s201 + $0x20] sm:$0xf] %v411
        %428 = vst [vmem:[%s201 + $0x24] sm:$0xf] %v412
        %429 = vst [vmem:[%s201 + $0x28] sm:$0xf] %v413
        %430 = vst [vmem:[%s201 + $0x2c] sm:$0xf] %v414
        %431 = vst [vmem:[%s201 + $0x30] sm:$0xf] %v415
        %432 = vst [vmem:[%s201 + $0x34] sm:$0xf] %v416
        %433 = vst [vmem:[%s201 + $0x38] sm:$0xf] %v417
        %434 = vst [vmem:[%s201 + $0x3c] sm:$0xf] %v418
        %s435 = sand.u32 %s82, 1
        %s436 = scalar_lea.sflag [#allocation4], %s435
        %s437 = sand.u32 %s82, 1
        %s438 = smul.addr %s437, 64
        %s439 = scalar_lea.vmem [#allocation7], %s438
        // Predicated region
        $region37: #{tpu_custom_call.1} parent=27 // pred_check
          %p440 = pneg %p92
        $region38: #{tpu_custom_call.1} parent=27 // pred_check_branch
          %442 = sbr.rel (%p440) target = $region40
        $region39: #{tpu_custom_call.1} parent=27 // pred_region
          %s443 = smul.u32 16, %s22
          %s445 = ssub.s32 1024, 1024
          %446 = vsyncadd %s436, %s445
          %s447 = smul.addr %s443, 64
          %s448 = scalar_lea.hbm %s2, %s447
          %s449 = sshll.u32 %s439, 4
          %s450 = int_to_ptr.vmem [resolvable:$true] %s449
          %455 = dma.vmem_to_hbm [thread:$0]  %s450, 1024, %s448, %s436, 64, 64, 4
        $region40: #{tpu_custom_call.1} parent=27 // pred_fallthru
          _
      $region28: #{tpu_custom_call.1} parent=5 // pred_fallthru
        _
      %p456 = scmp.le.s32.totalorder 2, %s17
      // Predicated region
      $region41: #{tpu_custom_call.1} parent=5 // pred_check
        %p457 = pneg %p456
      $region42: #{tpu_custom_call.1} parent=5 // pred_check_branch
        %459 = sbr.rel (%p457) target = $region44
      $region43: #{tpu_custom_call.1} parent=5 // pred_region
        %s460 = ssub.s32 %s17, 2
        // Predicated region
        $region45: #{tpu_custom_call.1} parent=43 // pred_check
          %p461 = pneg %p98
        $region46: #{tpu_custom_call.1} parent=43 // pred_check_branch
          %463 = sbr.rel (%p461) target = $region48
        $region47: #{tpu_custom_call.1} parent=43 // pred_region
          %s464 = sand.u32 %s83, 1
          %s465 = scalar_lea.sflag [#allocation4], %s464
          %s466 = sand.u32 %s83, 1
          %s467 = smul.addr %s466, 64
          %s468 = scalar_lea.vmem [#allocation7], %s467
          %469 = dma.done %s465, 1024
        $region48: #{tpu_custom_call.1} parent=43 // pred_fallthru
          _
      $region44: #{tpu_custom_call.1} parent=5 // pred_fallthru
        _
    $region6: #{tpu_custom_call.1} parent=1 // loop_footer
      %s21 = sadd.s32 1, %s17
    $region7: #{tpu_custom_call.1} parent=1 // loop_footer_branch
      %16 = sbr.rel target = $region3
    $region8: #{tpu_custom_call.1} parent=1 // loop_exit
      _
    %470 = vsyncpa [#allocation3], 1
    %s471 = scalar_lea.sflag [#allocation3], 1
    %472 = vsyncpa %s471, 1
    %473 = vsyncpa [#allocation6], 1
    %s474 = scalar_lea.sflag [#allocation6], 1
    %475 = vsyncpa %s474, 1
    %476 = vsyncpa [#allocation4], 1
    %s477 = scalar_lea.sflag [#allocation4], 1
    %478 = vsyncpa %s477, 1

</llo_original>
